<compile_context>
chip_gen: v5e
topology: v5e:2x2
jax: 0.10.0
libtpu: 0.0.40
codegen_flags: <defaults>
</compile_context>

<pallas_src>
import functools

import jax
import jax.numpy as jnp
from jax.experimental import pallas as pl
from jax.experimental.pallas import tpu as pltpu

BN_EPS = 1e-5
MXU_DTYPE = jnp.bfloat16        # MXU operand dtype (f32 accumulation)
LANE = 128                      # lane quantum (last dim)
SUBLANE = 8                     # sublane quantum (second-to-last dim)
TM_MAX = 256                    # max rows (M) per tile
TK_MAX = 512                    # max K per tile
VMEM_LIMIT = 32 * 1024 * 1024   # safe scoped-VMEM claim on v5e/v6e/v7x


def _round_up(x, m):
    return (x + m - 1) // m * m


def _pick_tile(dim, max_tile, quantum):
    """Largest multiple of `quantum` that divides `dim` and is <= max_tile."""
    best = quantum
    t = quantum
    while t <= min(max_tile, dim):
        if dim % t == 0:
            best = t
        t += quantum
    return best


def _pad2d(a, rows, cols):
    r, c = a.shape
    return jnp.pad(a, ((0, rows - r), (0, cols - c)))


# ----------------------------------------------------------------------------
# Kernel 1: tiled matmul (conv via im2col) + per-tile BN statistics
# ----------------------------------------------------------------------------
def _matmul_stats_kernel(a_ref, w_ref, y_ref, sum_ref, sq_ref, acc_ref):
    k = pl.program_id(2)

    @pl.when(k == 0)
    def _():
        acc_ref[...] = jnp.zeros_like(acc_ref)

    acc_ref[...] += jnp.dot(a_ref[...], w_ref[...],
                            preferred_element_type=jnp.float32)

    @pl.when(k == pl.num_programs(2) - 1)
    def _():
        acc = acc_ref[...]
        y_ref[...] = acc
        # Per-channel partial sums for batch-norm stats (XLU cross-sublane reduce).
        s = jnp.sum(acc, axis=0, keepdims=True)          # (1, tn)
        sq = jnp.sum(acc * acc, axis=0, keepdims=True)   # (1, tn)
        sum_ref[0] = jnp.broadcast_to(s, sum_ref.shape[1:])
        sq_ref[0] = jnp.broadcast_to(sq, sq_ref.shape[1:])


# ----------------------------------------------------------------------------
# Kernel 2: BN apply (+ optional residual) (+ optional ReLU), all f32
# ----------------------------------------------------------------------------
def _bn_apply_kernel(*refs, relu, has_residual):
    if has_residual:
        y_ref, scale_ref, shift_ref, r_ref, o_ref = refs
    else:
        y_ref, scale_ref, shift_ref, o_ref = refs
        r_ref = None
    y = y_ref[...] * scale_ref[...] + shift_ref[...]
    if r_ref is not None:
        y = y + r_ref[...]
    if relu:
        y = jnp.maximum(y, 0.0)
    o_ref[...] = y


# ----------------------------------------------------------------------------
# Glue: im2col, conv+BN wrapper, full BasicBlock forward
# ----------------------------------------------------------------------------
def im2col(x_nhwc, k, stride, pad):
    """(N,H,W,C) -> (N*Ho*Wo, k*k*C) with (kh, kw, c) ordering."""
    # TODO(synk): replace materialized im2col with implicit im2col (9 shifted
    # (M,Cin)x(Cin,Cout) matmuls accumulated in-kernel) to cut activation HBM
    # traffic ~9x for 3x3 convs.
    N, H, W, C = x_nhwc.shape
    xp = jnp.pad(x_nhwc, ((0, 0), (pad, pad), (pad, pad), (0, 0)))
    Ho = (H + 2 * pad - k) // stride + 1
    Wo = (W + 2 * pad - k) // stride + 1
    cols = []
    for kh in range(k):
        for kw in range(k):
            cols.append(xp[:, kh:kh + stride * Ho:stride,
                           kw:kw + stride * Wo:stride, :])
    patches = jnp.concatenate(cols, axis=-1) if len(cols) > 1 else cols[0]
    return patches.reshape(N * Ho * Wo, k * k * C), Ho, Wo


def conv_bn_act(x_nhwc, w_oihw, gamma, beta, *, stride, ksize, pad, relu,
                residual_pad=None):
    """conv (im2col matmul) + training-mode BatchNorm + optional residual/ReLU.
    Returns padded (Mp, Cout_pad) f32 result + geometry for chaining/slicing."""
    Cout = w_oihw.shape[0]
    patches, Ho, Wo = im2col(x_nhwc, ksize, stride, pad)
    M, K = patches.shape
    w_mat = jnp.transpose(w_oihw, (2, 3, 1, 0)).reshape(K, Cout)

    # --- padded / tiled geometry: lane-dense Cout, sublane-aligned M ---
    Cout_pad = _round_up(Cout, LANE)
    Kp = _round_up(K, LANE)
    Mp = _round_up(M, SUBLANE)
    tm = _pick_tile(Mp, TM_MAX, SUBLANE)
    tk = _pick_tile(Kp, TK_MAX, LANE)
    tn = LANE
    num_m, num_n, num_k = Mp // tm, Cout_pad // tn, Kp // tk

    a_p = _pad2d(patches, Mp, Kp).astype(MXU_DTYPE)
    w_p = _pad2d(w_mat, Kp, Cout_pad).astype(MXU_DTYPE)

    y_pad, sums, sqs = pl.pallas_call(
        _matmul_stats_kernel,
        out_shape=(
            jax.ShapeDtypeStruct((Mp, Cout_pad), jnp.float32),
            jax.ShapeDtypeStruct((num_m, SUBLANE, Cout_pad), jnp.float32),
            jax.ShapeDtypeStruct((num_m, SUBLANE, Cout_pad), jnp.float32),
        ),
        grid=(num_m, num_n, num_k),
        in_specs=[
            pl.BlockSpec((tm, tk), lambda i, j, k: (i, k)),
            pl.BlockSpec((tk, tn), lambda i, j, k: (k, j)),
        ],
        out_specs=(
            pl.BlockSpec((tm, tn), lambda i, j, k: (i, j)),
            pl.BlockSpec((1, SUBLANE, tn), lambda i, j, k: (i, 0, j)),
            pl.BlockSpec((1, SUBLANE, tn), lambda i, j, k: (i, 0, j)),
        ),
        scratch_shapes=[pltpu.VMEM((tm, tn), jnp.float32)],
        compiler_params=pltpu.CompilerParams(
            dimension_semantics=("parallel", "parallel", "arbitrary"),
            vmem_limit_bytes=VMEM_LIMIT),
        cost_estimate=pl.CostEstimate(
            flops=2 * Mp * Kp * Cout_pad,
            transcendentals=0,
            bytes_accessed=(Mp * Kp + Kp * Cout_pad) * 2 + Mp * Cout_pad * 4),
    )(a_p, w_p)

    # --- BatchNorm batch statistics (training mode); tiny (Cout_pad,) math ---
    ch_sum = jnp.sum(sums[:, 0, :], axis=0)
    ch_sq = jnp.sum(sqs[:, 0, :], axis=0)
    mean = ch_sum / M                                      # true M, not padded
    var = jnp.maximum(ch_sq / M - mean * mean, 0.0)        # biased variance
    gamma_p = _pad2d(gamma.astype(jnp.float32), 1, Cout_pad)
    beta_p = _pad2d(beta.astype(jnp.float32), 1, Cout_pad)
    scale = gamma_p * jax.lax.rsqrt(var + BN_EPS)          # (1, Cout_pad)
    shift = beta_p - mean * scale                          # (1, Cout_pad)

    # --- elementwise epilogue: y*scale + shift (+residual) (+ReLU) ---
    in_specs = [
        pl.BlockSpec((tm, tn), lambda i, j: (i, j)),
        pl.BlockSpec((1, tn), lambda i, j: (0, j)),
        pl.BlockSpec((1, tn), lambda i, j: (0, j)),
    ]
    args = [y_pad, scale, shift]
    if residual_pad is not None:
        assert residual_pad.shape == (Mp, Cout_pad)
        in_specs.append(pl.BlockSpec((tm, tn), lambda i, j: (i, j)))
        args.append(residual_pad.astype(jnp.float32))

    out_pad = pl.pallas_call(
        functools.partial(_bn_apply_kernel, relu=relu,
                          has_residual=residual_pad is not None),
        out_shape=jax.ShapeDtypeStruct((Mp, Cout_pad), jnp.float32),
        grid=(num_m, num_n),
        in_specs=in_specs,
        out_specs=pl.BlockSpec((tm, tn), lambda i, j: (i, j)),
        compiler_params=pltpu.CompilerParams(
            dimension_semantics=("parallel", "parallel"),
            vmem_limit_bytes=VMEM_LIMIT),
        cost_estimate=pl.CostEstimate(
            flops=4 * Mp * Cout_pad,
            transcendentals=0,
            bytes_accessed=Mp * Cout_pad * 4 *
                           (3 if residual_pad is not None else 2)),
    )(*args)

    return out_pad, Ho, Wo, M, Mp, Cout_pad


def init_basic_block_params(key, inplanes, planes, stride):
    k1, k2, k3 = jax.random.split(key, 3)
    params = {
        "w1": jax.random.normal(k1, (planes, inplanes, 3, 3), jnp.float32) * 0.1,
        "g1": jnp.ones((1, planes), jnp.float32),
        "b1": jnp.zeros((1, planes), jnp.float32),
        "w2": jax.random.normal(k2, (planes, planes, 3, 3), jnp.float32) * 0.1,
        "g2": jnp.ones((1, planes), jnp.float32),
        "b2": jnp.zeros((1, planes), jnp.float32),
    }
    if stride != 1 or inplanes != planes:
        params["wsc"] = jax.random.normal(k3, (planes, inplanes, 1, 1), jnp.float32) * 0.1
        params["gsc"] = jnp.ones((1, planes), jnp.float32)
        params["bsc"] = jnp.zeros((1, planes), jnp.float32)
    return params


def basic_block_forward(x_nchw, params, inplanes, planes, stride):
    x = jnp.transpose(x_nchw, (0, 2, 3, 1)).astype(jnp.float32)   # NHWC
    N, H, W, Cin = x.shape
    assert Cin == inplanes

    # conv1 (3x3, stride) + bn1 + ReLU — no residual read at all
    y1_pad, Ho, Wo, M, Mp, Cp = conv_bn_act(
        x, params["w1"], params["g1"], params["b1"],
        stride=stride, ksize=3, pad=1, relu=True)
    y1 = y1_pad[:M, :planes].reshape(N, Ho, Wo, planes)

    # shortcut branch (already in the padded conv2 geometry)
    if stride != 1 or inplanes != planes:
        sc_pad, _, _, _, Mp_sc, Cp_sc = conv_bn_act(
            x, params["wsc"], params["gsc"], params["bsc"],
            stride=stride, ksize=1, pad=0, relu=False)
        assert (Mp_sc, Cp_sc) == (Mp, Cp)
        residual_pad = sc_pad
    else:
        residual_pad = _pad2d(x.reshape(M, planes), Mp, Cp)   # identity, f32

    # conv2 (3x3, stride 1) + bn2 + residual add + ReLU
    out_pad, _, _, M2, Mp2, Cp2 = conv_bn_act(
        y1, params["w2"], params["g2"], params["b2"],
        stride=1, ksize=3, pad=1, relu=True, residual_pad=residual_pad)
    assert (M2, Mp2, Cp2) == (M, Mp, Cp)

    out = out_pad[:M, :planes].reshape(N, Ho, Wo, planes)
    return jnp.transpose(out, (0, 3, 1, 2))                       # NCHW


# ----------------------------------------------------------------------------
# Pure-JAX reference (same bf16-matmul / f32-BN decomposition) for checking
# ----------------------------------------------------------------------------
def _ref_conv_bn_act(x_nhwc, w_oihw, gamma, beta, *, stride, ksize, pad, relu,
                     residual=None):
    Cout = w_oihw.shape[0]
    patches, Ho, Wo = im2col(x_nhwc, ksize, stride, pad)
    w_mat = jnp.transpose(w_oihw, (2, 3, 1, 0)).reshape(-1, Cout)
    y = jnp.dot(patches.astype(MXU_DTYPE), w_mat.astype(MXU_DTYPE),
                preferred_element_type=jnp.float32)
    mean = jnp.mean(y, axis=0, keepdims=True)
    var = jnp.mean(y * y, axis=0, keepdims=True) - mean * mean
    out = (y - mean) * jax.lax.rsqrt(var + BN_EPS) * gamma + beta
    if residual is not None:
        out = out + residual
    if relu:
        out = jnp.maximum(out, 0.0)
    return out, Ho, Wo


def basic_block_ref(x_nchw, params, inplanes, planes, stride):
    x = jnp.transpose(x_nchw, (0, 2, 3, 1)).astype(jnp.float32)
    N, H, W, _ = x.shape
    y1, Ho, Wo = _ref_conv_bn_act(x, params["w1"], params["g1"], params["b1"],
                                  stride=stride, ksize=3, pad=1, relu=True)
    M = N * Ho * Wo
    if stride != 1 or inplanes != planes:
        res, _, _ = _ref_conv_bn_act(x, params["wsc"], params["gsc"],
                                     params["bsc"], stride=stride, ksize=1,
                                     pad=0, relu=False)
    else:
        res = x.reshape(M, planes)
    out, _, _ = _ref_conv_bn_act(y1.reshape(N, Ho, Wo, planes),
                                 params["w2"], params["g2"], params["b2"],
                                 stride=1, ksize=3, pad=1, relu=True,
                                 residual=res)
    return jnp.transpose(out.reshape(N, Ho, Wo, planes), (0, 3, 1, 2))


if __name__ == "__main__":
    key = jax.random.PRNGKey(0)
    kx, kp1, kp2 = jax.random.split(key, 3)

    block_fn = jax.jit(basic_block_forward, static_argnums=(2, 3, 4))

    # Config A: projection shortcut (stride=2, inplanes != planes)
    N, inplanes, H, W = 2, 4, 16, 16
    planes, stride = 8, 2
    x = jax.random.normal(kx, (N, inplanes, H, W), jnp.float32)
    params_a = init_basic_block_params(kp1, inplanes, planes, stride)
    out_a = jax.block_until_ready(block_fn(x, params_a, inplanes, planes, stride))
    assert out_a.shape == (N, planes, H // stride, W // stride)
    ref_a = basic_block_ref(x, params_a, inplanes, planes, stride)
    assert jnp.allclose(out_a, ref_a, rtol=1e-2, atol=1e-2), \
        float(jnp.max(jnp.abs(out_a - ref_a)))

    # Config B: identity shortcut (stride=1, inplanes == planes) — exercises
    # the multi-M-tile cross-tile BN statistics path (num_m > 1).
    params_b = init_basic_block_params(kp2, inplanes, inplanes, 1)
    out_b = jax.block_until_ready(block_fn(x, params_b, inplanes, inplanes, 1))
    assert out_b.shape == (N, inplanes, H, W)
    ref_b = basic_block_ref(x, params_b, inplanes, inplanes, 1)
    assert jnp.allclose(out_b, ref_b, rtol=1e-2, atol=1e-2), \
        float(jnp.max(jnp.abs(out_b - ref_b)))

    print("KERNEL_OK")
</pallas_src>

<mosaic_0001>
module attributes {stable_mosaic.version = 11 : i64} {
  func.func @_matmul_stats_kernel(%arg0: i32, %arg1: i32, %arg2: i32, %arg3: memref<128x128xbf16, #tpu.memory_space<vmem>>, %arg4: memref<128x128xbf16, #tpu.memory_space<vmem>>, %arg5: memref<128x128xf32, #tpu.memory_space<vmem>>, %arg6: memref<1x8x128xf32, #tpu.memory_space<vmem>>, %arg7: memref<1x8x128xf32, #tpu.memory_space<vmem>>, %arg8: memref<128x128xf32, #tpu.memory_space<vmem>>) attributes {dimension_semantics = [#tpu.dimension_semantics<parallel>, #tpu.dimension_semantics<parallel>, #tpu.dimension_semantics<arbitrary>], iteration_bounds = array<i64: 1, 1, 1>, scalar_prefetch = 0 : i64, scratch_operands = 1 : i64, tpu.core_type = #tpu.core_type<tc>, window_params = [{transform_indices = @transform_0, window_bounds = array<i64: 128, 128>}, {transform_indices = @transform_1, window_bounds = array<i64: 128, 128>}, {transform_indices = @transform_2, window_bounds = array<i64: 128, 128>}, {transform_indices = @transform_3, window_bounds = array<i64: 1, 8, 128>}, {transform_indices = @transform_4, window_bounds = array<i64: 1, 8, 128>}]} {
    %c0_i32 = arith.constant 0 : i32
    %0 = arith.cmpi eq, %arg2, %c0_i32 : i32
    %1 = arith.extui %0 : i1 to i32
    %c0_i32_0 = arith.constant 0 : i32
    %2 = arith.cmpi ne, %1, %c0_i32_0 : i32
    scf.if %2 {
      %cst_10 = arith.constant 0.000000e+00 : f32
      %12 = vector.broadcast %cst_10 : f32 to vector<128x128xf32>
      %c0_11 = arith.constant 0 : index
      %c0_12 = arith.constant 0 : index
      %13 = vector.load %arg8[%c0_11, %c0_12] : memref<128x128xf32, #tpu.memory_space<vmem>>, vector<128x128xf32>
      tpu.vector_store %arg8[%c0_11, %c0_12], %12 {strides = array<i32>} : memref<128x128xf32, #tpu.memory_space<vmem>>, vector<128x128xf32>,
    } else {
    }
    %c0 = arith.constant 0 : index
    %c0_1 = arith.constant 0 : index
    %3 = vector.load %arg8[%c0, %c0_1] : memref<128x128xf32, #tpu.memory_space<vmem>>, vector<128x128xf32>
    %c0_2 = arith.constant 0 : index
    %c0_3 = arith.constant 0 : index
    %4 = vector.load %arg3[%c0_2, %c0_3] : memref<128x128xbf16, #tpu.memory_space<vmem>>, vector<128x128xbf16>
    %c0_4 = arith.constant 0 : index
    %c0_5 = arith.constant 0 : index
    %5 = vector.load %arg4[%c0_4, %c0_5] : memref<128x128xbf16, #tpu.memory_space<vmem>>, vector<128x128xbf16>
    %cst = arith.constant dense<0.000000e+00> : vector<128x128xf32>
    %6 = tpu.matmul %4, %5, %cst {dimension_numbers = #tpu.dot_dimension_numbers<[1], [0], [0], [1], [0, 0, 1, 1], [], []>} : vector<128x128xbf16>, vector<128x128xbf16>, vector<128x128xf32> -> vector<128x128xf32>
    %7 = arith.addf %3, %6 : vector<128x128xf32>
    %c0_6 = arith.constant 0 : index
    %c0_7 = arith.constant 0 : index
    %8 = vector.load %arg8[%c0_6, %c0_7] : memref<128x128xf32, #tpu.memory_space<vmem>>, vector<128x128xf32>
    tpu.vector_store %arg8[%c0_6, %c0_7], %7 {strides = array<i32>} : memref<128x128xf32, #tpu.memory_space<vmem>>, vector<128x128xf32>,
    %c0_i32_8 = arith.constant 0 : i32
    %9 = arith.cmpi eq, %arg2, %c0_i32_8 : i32
    %10 = arith.extui %9 : i1 to i32
    %c0_i32_9 = arith.constant 0 : i32
    %11 = arith.cmpi ne, %10, %c0_i32_9 : i32
    scf.if %11 {
      %c0_10 = arith.constant 0 : index
      %c0_11 = arith.constant 0 : index
      %12 = vector.load %arg8[%c0_10, %c0_11] : memref<128x128xf32, #tpu.memory_space<vmem>>, vector<128x128xf32>
      %c0_12 = arith.constant 0 : index
      %c0_13 = arith.constant 0 : index
      %13 = vector.load %arg5[%c0_12, %c0_13] : memref<128x128xf32, #tpu.memory_space<vmem>>, vector<128x128xf32>
      tpu.vector_store %arg5[%c0_12, %c0_13], %12 {strides = array<i32>} : memref<128x128xf32, #tpu.memory_space<vmem>>, vector<128x128xf32>,
      %cst_14 = arith.constant dense<0.000000e+00> : vector<128xf32>
      %14 = vector.multi_reduction <add>, %12, %cst_14 [0] : vector<128x128xf32> to vector<128xf32>
      %15 = vector.shape_cast %14 : vector<128xf32> to vector<1x128xf32>
      %16 = arith.mulf %12, %12 : vector<128x128xf32>
      %cst_15 = arith.constant dense<0.000000e+00> : vector<128xf32>
      %17 = vector.multi_reduction <add>, %16, %cst_15 [0] : vector<128x128xf32> to vector<128xf32>
      %18 = vector.shape_cast %17 : vector<128xf32> to vector<1x128xf32>
      %19 = vector.shape_cast %15 : vector<1x128xf32> to vector<1x128xf32>
      %20 = vector.broadcast %19 : vector<1x128xf32> to vector<8x128xf32>
      %c0_16 = arith.constant 0 : index
      %c0_17 = arith.constant 0 : index
      %c0_18 = arith.constant 0 : index
      %21 = vector.load %arg6[%c0_16, %c0_17, %c0_18] : memref<1x8x128xf32, #tpu.memory_space<vmem>>, vector<1x8x128xf32>
      %22 = vector.shape_cast %21 : vector<1x8x128xf32> to vector<8x128xf32>
      %23 = vector.shape_cast %20 : vector<8x128xf32> to vector<1x8x128xf32>
      tpu.vector_store %arg6[%c0_16, %c0_17, %c0_18], %23 {strides = array<i32>} : memref<1x8x128xf32, #tpu.memory_space<vmem>>, vector<1x8x128xf32>,
      %24 = vector.shape_cast %18 : vector<1x128xf32> to vector<1x128xf32>
      %25 = vector.broadcast %24 : vector<1x128xf32> to vector<8x128xf32>
      %c0_19 = arith.constant 0 : index
      %c0_20 = arith.constant 0 : index
      %c0_21 = arith.constant 0 : index
      %26 = vector.load %arg7[%c0_19, %c0_20, %c0_21] : memref<1x8x128xf32, #tpu.memory_space<vmem>>, vector<1x8x128xf32>
      %27 = vector.shape_cast %26 : vector<1x8x128xf32> to vector<8x128xf32>
      %28 = vector.shape_cast %25 : vector<8x128xf32> to vector<1x8x128xf32>
      tpu.vector_store %arg7[%c0_19, %c0_20, %c0_21], %28 {strides = array<i32>} : memref<1x8x128xf32, #tpu.memory_space<vmem>>, vector<1x8x128xf32>,
    } else {
    }
    return
  }
  func.func @transform_0(%arg0: i32, %arg1: i32, %arg2: i32) -> (i32, i32) {
    %c0_i32 = arith.constant 0 : i32
    return %arg0, %arg2 : i32, i32
  }
  func.func @transform_1(%arg0: i32, %arg1: i32, %arg2: i32) -> (i32, i32) {
    %c0_i32 = arith.constant 0 : i32
    return %arg2, %arg1 : i32, i32
  }
  func.func @transform_2(%arg0: i32, %arg1: i32, %arg2: i32) -> (i32, i32) {
    %c0_i32 = arith.constant 0 : i32
    return %arg0, %arg1 : i32, i32
  }
  func.func @transform_3(%arg0: i32, %arg1: i32, %arg2: i32) -> (i32, i32, i32) {
    %c0_i32 = arith.constant 0 : i32
    %c0_i32_0 = arith.constant 0 : i32
    return %arg0, %c0_i32, %arg1 : i32, i32, i32
  }
  func.func @transform_4(%arg0: i32, %arg1: i32, %arg2: i32) -> (i32, i32, i32) {
    %c0_i32 = arith.constant 0 : i32
    %c0_i32_0 = arith.constant 0 : i32
    return %arg0, %c0_i32, %arg1 : i32, i32, i32
  }
}

module attributes {stable_mosaic.version = 11 : i64} {
  func.func @_bn_apply_kernel(%arg0: i32, %arg1: i32, %arg2: memref<128x128xf32, #tpu.memory_space<vmem>>, %arg3: memref<1x128xf32, #tpu.memory_space<vmem>>, %arg4: memref<1x128xf32, #tpu.memory_space<vmem>>, %arg5: memref<128x128xf32, #tpu.memory_space<vmem>>) attributes {dimension_semantics = [#tpu.dimension_semantics<parallel>, #tpu.dimension_semantics<parallel>], iteration_bounds = array<i64: 1, 1>, scalar_prefetch = 0 : i64, scratch_operands = 0 : i64, tpu.core_type = #tpu.core_type<tc>, window_params = [{transform_indices = @transform_0, window_bounds = array<i64: 128, 128>}, {transform_indices = @transform_1, window_bounds = array<i64: 1, 128>}, {transform_indices = @transform_2, window_bounds = array<i64: 1, 128>}, {transform_indices = @transform_3, window_bounds = array<i64: 128, 128>}]} {
    %c0 = arith.constant 0 : index
    %c0_0 = arith.constant 0 : index
    %0 = vector.load %arg2[%c0, %c0_0] : memref<128x128xf32, #tpu.memory_space<vmem>>, vector<128x128xf32>
    %c0_1 = arith.constant 0 : index
    %c0_2 = arith.constant 0 : index
    %1 = vector.load %arg3[%c0_1, %c0_2] : memref<1x128xf32, #tpu.memory_space<vmem>>, vector<1x128xf32>
    %2 = vector.broadcast %1 : vector<1x128xf32> to vector<128x128xf32>
    %3 = arith.mulf %0, %2 : vector<128x128xf32>
    %c0_3 = arith.constant 0 : index
    %c0_4 = arith.constant 0 : index
    %4 = vector.load %arg4[%c0_3, %c0_4] : memref<1x128xf32, #tpu.memory_space<vmem>>, vector<1x128xf32>
    %5 = vector.broadcast %4 : vector<1x128xf32> to vector<128x128xf32>
    %6 = arith.addf %3, %5 : vector<128x128xf32>
    %c0_5 = arith.constant 0 : index
    %c0_6 = arith.constant 0 : index
    %7 = vector.load %arg5[%c0_5, %c0_6] : memref<128x128xf32, #tpu.memory_space<vmem>>, vector<128x128xf32>
    tpu.vector_store %arg5[%c0_5, %c0_6], %6 {strides = array<i32>} : memref<128x128xf32, #tpu.memory_space<vmem>>, vector<128x128xf32>,
    return
  }
  func.func @transform_0(%arg0: i32, %arg1: i32) -> (i32, i32) {
    %c0_i32 = arith.constant 0 : i32
    return %arg0, %arg1 : i32, i32
  }
  func.func @transform_1(%arg0: i32, %arg1: i32) -> (i32, i32) {
    %c0_i32 = arith.constant 0 : i32
    %c0_i32_0 = arith.constant 0 : i32
    return %c0_i32, %arg1 : i32, i32
  }
  func.func @transform_2(%arg0: i32, %arg1: i32) -> (i32, i32) {
    %c0_i32 = arith.constant 0 : i32
    %c0_i32_0 = arith.constant 0 : i32
    return %c0_i32, %arg1 : i32, i32
  }
  func.func @transform_3(%arg0: i32, %arg1: i32) -> (i32, i32) {
    %c0_i32 = arith.constant 0 : i32
    return %arg0, %arg1 : i32, i32
  }
}

module attributes {stable_mosaic.version = 11 : i64} {
  func.func @_bn_apply_kernel(%arg0: i32, %arg1: i32, %arg2: memref<128x128xf32, #tpu.memory_space<vmem>>, %arg3: memref<1x128xf32, #tpu.memory_space<vmem>>, %arg4: memref<1x128xf32, #tpu.memory_space<vmem>>, %arg5: memref<128x128xf32, #tpu.memory_space<vmem>>) attributes {dimension_semantics = [#tpu.dimension_semantics<parallel>, #tpu.dimension_semantics<parallel>], iteration_bounds = array<i64: 1, 1>, scalar_prefetch = 0 : i64, scratch_operands = 0 : i64, tpu.core_type = #tpu.core_type<tc>, window_params = [{transform_indices = @transform_0, window_bounds = array<i64: 128, 128>}, {transform_indices = @transform_1, window_bounds = array<i64: 1, 128>}, {transform_indices = @transform_2, window_bounds = array<i64: 1, 128>}, {transform_indices = @transform_3, window_bounds = array<i64: 128, 128>}]} {
    %c0 = arith.constant 0 : index
    %c0_0 = arith.constant 0 : index
    %0 = vector.load %arg2[%c0, %c0_0] : memref<128x128xf32, #tpu.memory_space<vmem>>, vector<128x128xf32>
    %c0_1 = arith.constant 0 : index
    %c0_2 = arith.constant 0 : index
    %1 = vector.load %arg3[%c0_1, %c0_2] : memref<1x128xf32, #tpu.memory_space<vmem>>, vector<1x128xf32>
    %2 = vector.broadcast %1 : vector<1x128xf32> to vector<128x128xf32>
    %3 = arith.mulf %0, %2 : vector<128x128xf32>
    %c0_3 = arith.constant 0 : index
    %c0_4 = arith.constant 0 : index
    %4 = vector.load %arg4[%c0_3, %c0_4] : memref<1x128xf32, #tpu.memory_space<vmem>>, vector<1x128xf32>
    %5 = vector.broadcast %4 : vector<1x128xf32> to vector<128x128xf32>
    %6 = arith.addf %3, %5 : vector<128x128xf32>
    %cst = arith.constant 0.000000e+00 : f32
    %7 = vector.broadcast %cst : f32 to vector<128x128xf32>
    %8 = arith.maximumf %6, %7 : vector<128x128xf32>
    %c0_5 = arith.constant 0 : index
    %c0_6 = arith.constant 0 : index
    %9 = vector.load %arg5[%c0_5, %c0_6] : memref<128x128xf32, #tpu.memory_space<vmem>>, vector<128x128xf32>
    tpu.vector_store %arg5[%c0_5, %c0_6], %8 {strides = array<i32>} : memref<128x128xf32, #tpu.memory_space<vmem>>, vector<128x128xf32>,
    return
  }
  func.func @transform_0(%arg0: i32, %arg1: i32) -> (i32, i32) {
    %c0_i32 = arith.constant 0 : i32
    return %arg0, %arg1 : i32, i32
  }
  func.func @transform_1(%arg0: i32, %arg1: i32) -> (i32, i32) {
    %c0_i32 = arith.constant 0 : i32
    %c0_i32_0 = arith.constant 0 : i32
    return %c0_i32, %arg1 : i32, i32
  }
  func.func @transform_2(%arg0: i32, %arg1: i32) -> (i32, i32) {
    %c0_i32 = arith.constant 0 : i32
    %c0_i32_0 = arith.constant 0 : i32
    return %c0_i32, %arg1 : i32, i32
  }
  func.func @transform_3(%arg0: i32, %arg1: i32) -> (i32, i32) {
    %c0_i32 = arith.constant 0 : i32
    return %arg0, %arg1 : i32, i32
  }
}

module attributes {stable_mosaic.version = 11 : i64} {
  func.func @_bn_apply_kernel(%arg0: i32, %arg1: i32, %arg2: memref<128x128xf32, #tpu.memory_space<vmem>>, %arg3: memref<1x128xf32, #tpu.memory_space<vmem>>, %arg4: memref<1x128xf32, #tpu.memory_space<vmem>>, %arg5: memref<128x128xf32, #tpu.memory_space<vmem>>, %arg6: memref<128x128xf32, #tpu.memory_space<vmem>>) attributes {dimension_semantics = [#tpu.dimension_semantics<parallel>, #tpu.dimension_semantics<parallel>], iteration_bounds = array<i64: 1, 1>, scalar_prefetch = 0 : i64, scratch_operands = 0 : i64, tpu.core_type = #tpu.core_type<tc>, window_params = [{transform_indices = @transform_0, window_bounds = array<i64: 128, 128>}, {transform_indices = @transform_1, window_bounds = array<i64: 1, 128>}, {transform_indices = @transform_2, window_bounds = array<i64: 1, 128>}, {transform_indices = @transform_3, window_bounds = array<i64: 128, 128>}, {transform_indices = @transform_4, window_bounds = array<i64: 128, 128>}]} {
    %c0 = arith.constant 0 : index
    %c0_0 = arith.constant 0 : index
    %0 = vector.load %arg2[%c0, %c0_0] : memref<128x128xf32, #tpu.memory_space<vmem>>, vector<128x128xf32>
    %c0_1 = arith.constant 0 : index
    %c0_2 = arith.constant 0 : index
    %1 = vector.load %arg3[%c0_1, %c0_2] : memref<1x128xf32, #tpu.memory_space<vmem>>, vector<1x128xf32>
    %2 = vector.broadcast %1 : vector<1x128xf32> to vector<128x128xf32>
    %3 = arith.mulf %0, %2 : vector<128x128xf32>
    %c0_3 = arith.constant 0 : index
    %c0_4 = arith.constant 0 : index
    %4 = vector.load %arg4[%c0_3, %c0_4] : memref<1x128xf32, #tpu.memory_space<vmem>>, vector<1x128xf32>
    %5 = vector.broadcast %4 : vector<1x128xf32> to vector<128x128xf32>
    %6 = arith.addf %3, %5 : vector<128x128xf32>
    %c0_5 = arith.constant 0 : index
    %c0_6 = arith.constant 0 : index
    %7 = vector.load %arg5[%c0_5, %c0_6] : memref<128x128xf32, #tpu.memory_space<vmem>>, vector<128x128xf32>
    %8 = arith.addf %6, %7 : vector<128x128xf32>
    %cst = arith.constant 0.000000e+00 : f32
    %9 = vector.broadcast %cst : f32 to vector<128x128xf32>
    %10 = arith.maximumf %8, %9 : vector<128x128xf32>
    %c0_7 = arith.constant 0 : index
    %c0_8 = arith.constant 0 : index
    %11 = vector.load %arg6[%c0_7, %c0_8] : memref<128x128xf32, #tpu.memory_space<vmem>>, vector<128x128xf32>
    tpu.vector_store %arg6[%c0_7, %c0_8], %10 {strides = array<i32>} : memref<128x128xf32, #tpu.memory_space<vmem>>, vector<128x128xf32>,
    return
  }
  func.func @transform_0(%arg0: i32, %arg1: i32) -> (i32, i32) {
    %c0_i32 = arith.constant 0 : i32
    return %arg0, %arg1 : i32, i32
  }
  func.func @transform_1(%arg0: i32, %arg1: i32) -> (i32, i32) {
    %c0_i32 = arith.constant 0 : i32
    %c0_i32_0 = arith.constant 0 : i32
    return %c0_i32, %arg1 : i32, i32
  }
  func.func @transform_2(%arg0: i32, %arg1: i32) -> (i32, i32) {
    %c0_i32 = arith.constant 0 : i32
    %c0_i32_0 = arith.constant 0 : i32
    return %c0_i32, %arg1 : i32, i32
  }
  func.func @transform_3(%arg0: i32, %arg1: i32) -> (i32, i32) {
    %c0_i32 = arith.constant 0 : i32
    return %arg0, %arg1 : i32, i32
  }
  func.func @transform_4(%arg0: i32, %arg1: i32) -> (i32, i32) {
    %c0_i32 = arith.constant 0 : i32
    return %arg0, %arg1 : i32, i32
  }
}

</mosaic_0001>

<llo_original>
// kernel: basic_block_forward.9
$region0: #{basic_block_forward.9}
  #allocation0 [shape = 'u32[]', space=smem, size = 0x4, offset = 0x4, fixed_abs, tag = 'smem constant byte address 0x4 - core index']
  #allocation1 [shape = 'u32[72,128]{1,0:T(1,128)}', space=vmem, size = 0x9000, scoped, tag = 'internal scratch']
  %s0 = inlined_call_operand.vmem [shape: f32[128,128], index: 0, kind: input, shape index: {}]
  %s1 = inlined_call_operand.vmem [shape: f32[1,128], index: 1, kind: input, shape index: {}]
  %s2 = inlined_call_operand.vmem [shape: f32[1,128], index: 2, kind: input, shape index: {}]
  %s3 = inlined_call_operand.vmem [shape: f32[128,128], index: 3, kind: output, shape index: {}]
  %s4 = sld [smem:[#allocation0]]
  $region22: #{basic_block_forward.9} parent=0
    _
  %s6 = ssub.s32 1, %s4
  %s7 = scalar_select 0, %s6, %s4
  // Predicated region
  $region2: #{basic_block_forward.9} parent=0 // pred_check
    _
  $region3: #{basic_block_forward.9} parent=0 // pred_check_branch
    %9 = sbr.rel (0) target = $region5
  $region4: #{basic_block_forward.9} parent=0 // pred_region
    _
  $region5: #{basic_block_forward.9} parent=0 // pred_fallthru
    _
  // Predicated region
  $region6: #{basic_block_forward.9} parent=0 // pred_check
    _
  $region7: #{basic_block_forward.9} parent=0 // pred_check_branch
    %11 = sbr.rel (0) target = $region9
  $region8: #{basic_block_forward.9} parent=0 // pred_region
    _
  $region9: #{basic_block_forward.9} parent=0 // pred_fallthru
    _
  // Predicated region
  $region10: #{basic_block_forward.9} parent=0 // pred_check
    _
  $region11: #{basic_block_forward.9} parent=0 // pred_check_branch
    %13 = sbr.rel (0) target = $region13
  $region12: #{basic_block_forward.9} parent=0 // pred_region
    _
  $region13: #{basic_block_forward.9} parent=0 // pred_fallthru
    _
  %v14 = vld [vmem:[%s0] sm:$0xff]
  %v15 = vld [vmem:[%s0 + $0x8] sm:$0xff]
  %v16 = vld [vmem:[%s0 + $0x10] sm:$0xff]
  %v17 = vld [vmem:[%s0 + $0x18] sm:$0xff]
  %v18 = vld [vmem:[%s0 + $0x20] sm:$0xff]
  %v19 = vld [vmem:[%s0 + $0x28] sm:$0xff]
  %v20 = vld [vmem:[%s0 + $0x30] sm:$0xff]
  %v21 = vld [vmem:[%s0 + $0x38] sm:$0xff]
  %v22 = vld [vmem:[%s0 + $0x40] sm:$0xff]
  %v23 = vld [vmem:[%s0 + $0x48] sm:$0xff]
  %v24 = vld [vmem:[%s0 + $0x50] sm:$0xff]
  %v25 = vld [vmem:[%s0 + $0x58] sm:$0xff]
  %v26 = vld [vmem:[%s0 + $0x60] sm:$0xff]
  %v27 = vld [vmem:[%s0 + $0x68] sm:$0xff]
  %v28 = vld [vmem:[%s0 + $0x70] sm:$0xff]
  %v29 = vld [vmem:[%s0 + $0x78] sm:$0xff]
  %v30 = vld [vmem:[%s1] sm:$0x1]
  %v32 = vperm.slane %v30, 0
  %v34 = vmul.f32 %v14, %v32
  %v35 = vmul.f32 %v15, %v32
  %v36 = vmul.f32 %v16, %v32
  %v37 = vmul.f32 %v17, %v32
  %v38 = vmul.f32 %v18, %v32
  %v39 = vmul.f32 %v19, %v32
  %v40 = vmul.f32 %v20, %v32
  %v41 = vmul.f32 %v21, %v32
  %v42 = vmul.f32 %v22, %v32
  %v43 = vmul.f32 %v23, %v32
  %v44 = vmul.f32 %v24, %v32
  %v45 = vmul.f32 %v25, %v32
  %v46 = vmul.f32 %v26, %v32
  %v47 = vmul.f32 %v27, %v32
  %v48 = vmul.f32 %v28, %v32
  %v49 = vmul.f32 %v29, %v32
  %v50 = vld [vmem:[%s2] sm:$0x1]
  %v52 = vperm.slane %v50, 0
  %v54 = vadd.f32 %v34, %v52
  %v55 = vadd.f32 %v35, %v52
  %v56 = vadd.f32 %v36, %v52
  %v57 = vadd.f32 %v37, %v52
  %v58 = vadd.f32 %v38, %v52
  %v59 = vadd.f32 %v39, %v52
  %v60 = vadd.f32 %v40, %v52
  %v61 = vadd.f32 %v41, %v52
  %v62 = vadd.f32 %v42, %v52
  %v63 = vadd.f32 %v43, %v52
  %v64 = vadd.f32 %v44, %v52
  %v65 = vadd.f32 %v45, %v52
  %v66 = vadd.f32 %v46, %v52
  %v67 = vadd.f32 %v47, %v52
  %v68 = vadd.f32 %v48, %v52
  %v69 = vadd.f32 %v49, %v52
  %70 = vst [vmem:[%s3] sm:$0xff] %v54
  %71 = vst [vmem:[%s3 + $0x8] sm:$0xff] %v55
  %72 = vst [vmem:[%s3 + $0x10] sm:$0xff] %v56
  %73 = vst [vmem:[%s3 + $0x18] sm:$0xff] %v57
  %74 = vst [vmem:[%s3 + $0x20] sm:$0xff] %v58
  %75 = vst [vmem:[%s3 + $0x28] sm:$0xff] %v59
  %76 = vst [vmem:[%s3 + $0x30] sm:$0xff] %v60
  %77 = vst [vmem:[%s3 + $0x38] sm:$0xff] %v61
  %78 = vst [vmem:[%s3 + $0x40] sm:$0xff] %v62
  %79 = vst [vmem:[%s3 + $0x48] sm:$0xff] %v63
  %80 = vst [vmem:[%s3 + $0x50] sm:$0xff] %v64
  %81 = vst [vmem:[%s3 + $0x58] sm:$0xff] %v65
  %82 = vst [vmem:[%s3 + $0x60] sm:$0xff] %v66
  %83 = vst [vmem:[%s3 + $0x68] sm:$0xff] %v67
  %84 = vst [vmem:[%s3 + $0x70] sm:$0xff] %v68
  %85 = vst [vmem:[%s3 + $0x78] sm:$0xff] %v69
  // Predicated region
  $region14: #{basic_block_forward.9} parent=0 // pred_check
    _
  $region15: #{basic_block_forward.9} parent=0 // pred_check_branch
    %87 = sbr.rel (0) target = $region17
  $region16: #{basic_block_forward.9} parent=0 // pred_region
    _
  $region17: #{basic_block_forward.9} parent=0 // pred_fallthru
    _
  // Predicated region
  $region18: #{basic_block_forward.9} parent=0 // pred_check
    _
  $region19: #{basic_block_forward.9} parent=0 // pred_check_branch
    %89 = sbr.rel (0) target = $region21
  $region20: #{basic_block_forward.9} parent=0 // pred_region
    _
  $region21: #{basic_block_forward.9} parent=0 // pred_fallthru
    _

// kernel: basic_block_forward.8
$region0: #{basic_block_forward.8}
  #allocation0 [shape = 'u32[]', space=smem, size = 0x4, offset = 0x4, fixed_abs, tag = 'smem constant byte address 0x4 - core index']
  #allocation1 [shape = 'u32[72,128]{1,0:T(1,128)}', space=vmem, size = 0x9000, scoped, tag = 'internal scratch']
  #allocation2 [shape = 'f32[128,128]{1,0:T(8,128)}', space=vmem, size = 0x10000, scoped, tag = 'scratch operand']
  %s0 = inlined_call_operand.vmem [shape: bf16[128,128], index: 0, kind: input, shape index: {}]
  %s1 = inlined_call_operand.vmem [shape: bf16[128,128], index: 1, kind: input, shape index: {}]
  %s2 = inlined_call_operand.vmem [shape: f32[128,128], index: 2, kind: output, shape index: {0}]
  %s3 = inlined_call_operand.vmem [shape: f32[1,8,128], index: 3, kind: output, shape index: {1}]
  %s4 = inlined_call_operand.vmem [shape: f32[1,8,128], index: 4, kind: output, shape index: {2}]
  %5 = xla_tuple %s2, %s3, %s4
  %s6 = sld [smem:[#allocation0]]
  $region42: #{basic_block_forward.8} parent=0
    _
  %s8 = ssub.s32 1, %s6
  %s9 = scalar_select 0, %s8, %s6
  // Predicated region
  $region2: #{basic_block_forward.8} parent=0 // pred_check
    _
  $region3: #{basic_block_forward.8} parent=0 // pred_check_branch
    %11 = sbr.rel (0) target = $region5
  $region4: #{basic_block_forward.8} parent=0 // pred_region
    _
  $region5: #{basic_block_forward.8} parent=0 // pred_fallthru
    _
  // Predicated region
  $region6: #{basic_block_forward.8} parent=0 // pred_check
    _
  $region7: #{basic_block_forward.8} parent=0 // pred_check_branch
    %13 = sbr.rel (0) target = $region9
  $region8: #{basic_block_forward.8} parent=0 // pred_region
    _
  $region9: #{basic_block_forward.8} parent=0 // pred_fallthru
    _
  %p14 = scmp.eq.s32.totalorder 0, 0
  // Predicated region
  $region10: #{basic_block_forward.8} parent=0 // pred_check
    %p15 = pneg %p14
  $region11: #{basic_block_forward.8} parent=0 // pred_check_branch
    %17 = sbr.rel (%p15) target = $region13
  $region12: #{basic_block_forward.8} parent=0 // pred_region
    %18 = vst [vmem:[#allocation2] sm:$0xff] 0.0
    %19 = vst [vmem:[#allocation2 + $0x8] sm:$0xff] 0.0
    %20 = vst [vmem:[#allocation2 + $0x10] sm:$0xff] 0.0
    %21 = vst [vmem:[#allocation2 + $0x18] sm:$0xff] 0.0
    %22 = vst [vmem:[#allocation2 + $0x20] sm:$0xff] 0.0
    %23 = vst [vmem:[#allocation2 + $0x28] sm:$0xff] 0.0
    %24 = vst [vmem:[#allocation2 + $0x30] sm:$0xff] 0.0
    %25 = vst [vmem:[#allocation2 + $0x38] sm:$0xff] 0.0
    %26 = vst [vmem:[#allocation2 + $0x40] sm:$0xff] 0.0
    %27 = vst [vmem:[#allocation2 + $0x48] sm:$0xff] 0.0
    %28 = vst [vmem:[#allocation2 + $0x50] sm:$0xff] 0.0
    %29 = vst [vmem:[#allocation2 + $0x58] sm:$0xff] 0.0
    %30 = vst [vmem:[#allocation2 + $0x60] sm:$0xff] 0.0
    %31 = vst [vmem:[#allocation2 + $0x68] sm:$0xff] 0.0
    %32 = vst [vmem:[#allocation2 + $0x70] sm:$0xff] 0.0
    %33 = vst [vmem:[#allocation2 + $0x78] sm:$0xff] 0.0
  $region13: #{basic_block_forward.8} parent=0 // pred_fallthru
    _
  %v34 = vld [vmem:[#allocation2] sm:$0xff]
  %v35 = vld [vmem:[#allocation2 + $0x8] sm:$0xff]
  %v36 = vld [vmem:[#allocation2 + $0x10] sm:$0xff]
  %v37 = vld [vmem:[#allocation2 + $0x18] sm:$0xff]
  %v38 = vld [vmem:[#allocation2 + $0x20] sm:$0xff]
  %v39 = vld [vmem:[#allocation2 + $0x28] sm:$0xff]
  %v40 = vld [vmem:[#allocation2 + $0x30] sm:$0xff]
  %v41 = vld [vmem:[#allocation2 + $0x38] sm:$0xff]
  %v42 = vld [vmem:[#allocation2 + $0x40] sm:$0xff]
  %v43 = vld [vmem:[#allocation2 + $0x48] sm:$0xff]
  %v44 = vld [vmem:[#allocation2 + $0x50] sm:$0xff]
  %v45 = vld [vmem:[#allocation2 + $0x58] sm:$0xff]
  %v46 = vld [vmem:[#allocation2 + $0x60] sm:$0xff]
  %v47 = vld [vmem:[#allocation2 + $0x68] sm:$0xff]
  %v48 = vld [vmem:[#allocation2 + $0x70] sm:$0xff]
  %v49 = vld [vmem:[#allocation2 + $0x78] sm:$0xff]
  %v50 = vld [vmem:[%s0] sm:$0xf]
  %v51 = vld [vmem:[%s0 + $0x4] sm:$0xf]
  %v52 = vld [vmem:[%s0 + $0x8] sm:$0xf]
  %v53 = vld [vmem:[%s0 + $0xc] sm:$0xf]
  %v54 = vld [vmem:[%s0 + $0x10] sm:$0xf]
  %v55 = vld [vmem:[%s0 + $0x14] sm:$0xf]
  %v56 = vld [vmem:[%s0 + $0x18] sm:$0xf]
  %v57 = vld [vmem:[%s0 + $0x1c] sm:$0xf]
  %v58 = vld [vmem:[%s0 + $0x20] sm:$0xf]
  %v59 = vld [vmem:[%s0 + $0x24] sm:$0xf]
  %v60 = vld [vmem:[%s0 + $0x28] sm:$0xf]
  %v61 = vld [vmem:[%s0 + $0x2c] sm:$0xf]
  %v62 = vld [vmem:[%s0 + $0x30] sm:$0xf]
  %v63 = vld [vmem:[%s0 + $0x34] sm:$0xf]
  %v64 = vld [vmem:[%s0 + $0x38] sm:$0xf]
  %v65 = vld [vmem:[%s0 + $0x3c] sm:$0xf]
  %v66 = vld [vmem:[%s1] sm:$0xf]
  %v67 = vld [vmem:[%s1 + $0x4] sm:$0xf]
  %v68 = vld [vmem:[%s1 + $0x8] sm:$0xf]
  %v69 = vld [vmem:[%s1 + $0xc] sm:$0xf]
  %v70 = vld [vmem:[%s1 + $0x10] sm:$0xf]
  %v71 = vld [vmem:[%s1 + $0x14] sm:$0xf]
  %v72 = vld [vmem:[%s1 + $0x18] sm:$0xf]
  %v73 = vld [vmem:[%s1 + $0x1c] sm:$0xf]
  %v74 = vld [vmem:[%s1 + $0x20] sm:$0xf]
  %v75 = vld [vmem:[%s1 + $0x24] sm:$0xf]
  %v76 = vld [vmem:[%s1 + $0x28] sm:$0xf]
  %v77 = vld [vmem:[%s1 + $0x2c] sm:$0xf]
  %v78 = vld [vmem:[%s1 + $0x30] sm:$0xf]
  %v79 = vld [vmem:[%s1 + $0x34] sm:$0xf]
  %v80 = vld [vmem:[%s1 + $0x38] sm:$0xf]
  %v81 = vld [vmem:[%s1 + $0x3c] sm:$0xf]
  %v98 = vunpack.c.l.b16 %v50
  %v99 = vunpack.c.l.b16 %v51
  %v100 = vunpack.c.l.b16 %v52
  %v101 = vunpack.c.l.b16 %v53
  %v102 = vunpack.c.l.b16 %v54
  %v103 = vunpack.c.l.b16 %v55
  %v104 = vunpack.c.l.b16 %v56
  %v105 = vunpack.c.l.b16 %v57
  %v106 = vunpack.c.l.b16 %v58
  %v107 = vunpack.c.l.b16 %v59
  %v108 = vunpack.c.l.b16 %v60
  %v109 = vunpack.c.l.b16 %v61
  %v110 = vunpack.c.l.b16 %v62
  %v111 = vunpack.c.l.b16 %v63
  %v112 = vunpack.c.l.b16 %v64
  %v113 = vunpack.c.l.b16 %v65
  %v114 = vpack.c.b16 %v99, %v98
  %v115 = vpack.c.b16 %v101, %v100
  %v116 = vpack.c.b16 %v103, %v102
  %v117 = vpack.c.b16 %v105, %v104
  %v118 = vpack.c.b16 %v107, %v106
  %v119 = vpack.c.b16 %v109, %v108
  %v120 = vpack.c.b16 %v111, %v110
  %v121 = vpack.c.b16 %v113, %v112
  %v146 = vunpack.c.l.b16 %v66
  %v147 = vunpack.c.l.b16 %v67
  %v148 = vunpack.c.l.b16 %v68
  %v149 = vunpack.c.l.b16 %v69
  %v150 = vunpack.c.l.b16 %v70
  %v151 = vunpack.c.l.b16 %v71
  %v152 = vunpack.c.l.b16 %v72
  %v153 = vunpack.c.l.b16 %v73
  %v154 = vunpack.c.l.b16 %v74
  %v155 = vunpack.c.l.b16 %v75
  %v156 = vunpack.c.l.b16 %v76
  %v157 = vunpack.c.l.b16 %v77
  %v158 = vunpack.c.l.b16 %v78
  %v159 = vunpack.c.l.b16 %v79
  %v160 = vunpack.c.l.b16 %v80
  %v161 = vunpack.c.l.b16 %v81
  %v162 = vpack.c.b16 %v147, %v146
  %v163 = vpack.c.b16 %v149, %v148
  %v164 = vpack.c.b16 %v151, %v150
  %v165 = vpack.c.b16 %v153, %v152
  %v166 = vpack.c.b16 %v155, %v154
  %v167 = vpack.c.b16 %v157, %v156
  %v168 = vpack.c.b16 %v159, %v158
  %v169 = vpack.c.b16 %v161, %v160
  %178 = vmatpush.bf16.msra.mxu0 %v169
  %179 = vmatpush.bf16.msra.mxu0 %v168
  %180 = vmatpush.bf16.msra.mxu0 %v167
  %181 = vmatpush.bf16.msra.mxu0 %v166
  %182 = vmatpush.bf16.msra.mxu0 %v165
  %183 = vmatpush.bf16.msra.mxu0 %v164
  %184 = vmatpush.bf16.msra.mxu0 %v163
  %185 = vmatpush.bf16.msra.mxu0 %v162
  %186 = vmatmul.bf16.gmra.mxu0 %v114
  %v187 = vpop.f32.mrf.mxu0
  %v188 = vadd.f32 0.0, %v187
  %v189 = vpop.f32.mrf.mxu0
  %v190 = vadd.f32 0.0, %v189
  %191 = vmatmul.bf16.gmra.mxu0 %v115
  %v192 = vpop.f32.mrf.mxu0
  %v193 = vadd.f32 0.0, %v192
  %v194 = vpop.f32.mrf.mxu0
  %v195 = vadd.f32 0.0, %v194
  %196 = vmatmul.bf16.gmra.mxu0 %v116
  %v197 = vpop.f32.mrf.mxu0
  %v198 = vadd.f32 0.0, %v197
  %v199 = vpop.f32.mrf.mxu0
  %v200 = vadd.f32 0.0, %v199
  %201 = vmatmul.bf16.gmra.mxu0 %v117
  %v202 = vpop.f32.mrf.mxu0
  %v203 = vadd.f32 0.0, %v202
  %v204 = vpop.f32.mrf.mxu0
  %v205 = vadd.f32 0.0, %v204
  %206 = vmatmul.bf16.gmra.mxu0 %v118
  %v207 = vpop.f32.mrf.mxu0
  %v208 = vadd.f32 0.0, %v207
  %v209 = vpop.f32.mrf.mxu0
  %v210 = vadd.f32 0.0, %v209
  %211 = vmatmul.bf16.gmra.mxu0 %v119
  %v212 = vpop.f32.mrf.mxu0
  %v213 = vadd.f32 0.0, %v212
  %v214 = vpop.f32.mrf.mxu0
  %v215 = vadd.f32 0.0, %v214
  %216 = vmatmul.bf16.gmra.mxu0 %v120
  %v217 = vpop.f32.mrf.mxu0
  %v218 = vadd.f32 0.0, %v217
  %v219 = vpop.f32.mrf.mxu0
  %v220 = vadd.f32 0.0, %v219
  %221 = vmatmul.bf16.gmra.mxu0 %v121
  %v222 = vpop.f32.mrf.mxu0
  %v223 = vadd.f32 0.0, %v222
  %v224 = vpop.f32.mrf.mxu0
  %v225 = vadd.f32 0.0, %v224
  %226 = vdwg.mxu0
  %v227 = vadd.f32 %v34, %v188
  %v228 = vadd.f32 %v35, %v190
  %v229 = vadd.f32 %v36, %v193
  %v230 = vadd.f32 %v37, %v195
  %v231 = vadd.f32 %v38, %v198
  %v232 = vadd.f32 %v39, %v200
  %v233 = vadd.f32 %v40, %v203
  %v234 = vadd.f32 %v41, %v205
  %v235 = vadd.f32 %v42, %v208
  %v236 = vadd.f32 %v43, %v210
  %v237 = vadd.f32 %v44, %v213
  %v238 = vadd.f32 %v45, %v215
  %v239 = vadd.f32 %v46, %v218
  %v240 = vadd.f32 %v47, %v220
  %v241 = vadd.f32 %v48, %v223
  %v242 = vadd.f32 %v49, %v225
  %243 = vst [vmem:[#allocation2] sm:$0xff] %v227
  %244 = vst [vmem:[#allocation2 + $0x8] sm:$0xff] %v228
  %245 = vst [vmem:[#allocation2 + $0x10] sm:$0xff] %v229
  %246 = vst [vmem:[#allocation2 + $0x18] sm:$0xff] %v230
  %247 = vst [vmem:[#allocation2 + $0x20] sm:$0xff] %v231
  %248 = vst [vmem:[#allocation2 + $0x28] sm:$0xff] %v232
  %249 = vst [vmem:[#allocation2 + $0x30] sm:$0xff] %v233
  %250 = vst [vmem:[#allocation2 + $0x38] sm:$0xff] %v234
  %251 = vst [vmem:[#allocation2 + $0x40] sm:$0xff] %v235
  %252 = vst [vmem:[#allocation2 + $0x48] sm:$0xff] %v236
  %253 = vst [vmem:[#allocation2 + $0x50] sm:$0xff] %v237
  %254 = vst [vmem:[#allocation2 + $0x58] sm:$0xff] %v238
  %255 = vst [vmem:[#allocation2 + $0x60] sm:$0xff] %v239
  %256 = vst [vmem:[#allocation2 + $0x68] sm:$0xff] %v240
  %257 = vst [vmem:[#allocation2 + $0x70] sm:$0xff] %v241
  %258 = vst [vmem:[#allocation2 + $0x78] sm:$0xff] %v242
  // Predicated region
  $region14: #{basic_block_forward.8} parent=0 // pred_check
    %p259 = pneg %p14
  $region15: #{basic_block_forward.8} parent=0 // pred_check_branch
    %261 = sbr.rel (%p259) target = $region17
  $region16: #{basic_block_forward.8} parent=0 // pred_region
    %v262 = vld [vmem:[#allocation2] sm:$0xff]
    %v263 = vld [vmem:[#allocation2 + $0x8] sm:$0xff]
    %v264 = vld [vmem:[#allocation2 + $0x10] sm:$0xff]
    %v265 = vld [vmem:[#allocation2 + $0x18] sm:$0xff]
    %v266 = vld [vmem:[#allocation2 + $0x20] sm:$0xff]
    %v267 = vld [vmem:[#allocation2 + $0x28] sm:$0xff]
    %v268 = vld [vmem:[#allocation2 + $0x30] sm:$0xff]
    %v269 = vld [vmem:[#allocation2 + $0x38] sm:$0xff]
    %v270 = vld [vmem:[#allocation2 + $0x40] sm:$0xff]
    %v271 = vld [vmem:[#allocation2 + $0x48] sm:$0xff]
    %v272 = vld [vmem:[#allocation2 + $0x50] sm:$0xff]
    %v273 = vld [vmem:[#allocation2 + $0x58] sm:$0xff]
    %v274 = vld [vmem:[#allocation2 + $0x60] sm:$0xff]
    %v275 = vld [vmem:[#allocation2 + $0x68] sm:$0xff]
    %v276 = vld [vmem:[#allocation2 + $0x70] sm:$0xff]
    %v277 = vld [vmem:[#allocation2 + $0x78] sm:$0xff]
    %278 = vst [vmem:[%s2] sm:$0xff] %v262
    %279 = vst [vmem:[%s2 + $0x8] sm:$0xff] %v263
    %280 = vst [vmem:[%s2 + $0x10] sm:$0xff] %v264
    %281 = vst [vmem:[%s2 + $0x18] sm:$0xff] %v265
    %282 = vst [vmem:[%s2 + $0x20] sm:$0xff] %v266
    %283 = vst [vmem:[%s2 + $0x28] sm:$0xff] %v267
    %284 = vst [vmem:[%s2 + $0x30] sm:$0xff] %v268
    %285 = vst [vmem:[%s2 + $0x38] sm:$0xff] %v269
    %286 = vst [vmem:[%s2 + $0x40] sm:$0xff] %v270
    %287 = vst [vmem:[%s2 + $0x48] sm:$0xff] %v271
    %288 = vst [vmem:[%s2 + $0x50] sm:$0xff] %v272
    %289 = vst [vmem:[%s2 + $0x58] sm:$0xff] %v273
    %290 = vst [vmem:[%s2 + $0x60] sm:$0xff] %v274
    %291 = vst [vmem:[%s2 + $0x68] sm:$0xff] %v275
    %292 = vst [vmem:[%s2 + $0x70] sm:$0xff] %v276
    %293 = vst [vmem:[%s2 + $0x78] sm:$0xff] %v277
    %v294 = vadd.f32 %v262, %v263
    %v295 = vadd.f32 %v294, %v264
    %v296 = vadd.f32 %v295, %v265
    %v297 = vadd.f32 %v296, %v266
    %v298 = vadd.f32 %v297, %v267
    %v299 = vadd.f32 %v298, %v268
    %v300 = vadd.f32 %v299, %v269
    %v301 = vadd.f32 %v300, %v270
    %v302 = vadd.f32 %v301, %v271
    %v303 = vadd.f32 %v302, %v272
    %v304 = vadd.f32 %v303, %v273
    %v305 = vadd.f32 %v304, %v274
    %v306 = vadd.f32 %v305, %v275
    %v307 = vadd.f32 %v306, %v276
    %v308 = vadd.f32 %v307, %v277
    %v309 = vrot.slane %v308, 4
    %v310 = vadd.f32 %v308, %v309
    %v311 = vrot.slane %v310, 2
    %v312 = vadd.f32 %v310, %v311
    %v313 = vrot.slane %v312, 1
    %v314 = vadd.f32 %v312, %v313
    %v315 = vmul.f32 %v262, %v262
    %v316 = vmul.f32 %v263, %v263
    %v317 = vmul.f32 %v264, %v264
    %v318 = vmul.f32 %v265, %v265
    %v319 = vmul.f32 %v266, %v266
    %v320 = vmul.f32 %v267, %v267
    %v321 = vmul.f32 %v268, %v268
    %v322 = vmul.f32 %v269, %v269
    %v323 = vmul.f32 %v270, %v270
    %v324 = vmul.f32 %v271, %v271
    %v325 = vmul.f32 %v272, %v272
    %v326 = vmul.f32 %v273, %v273
    %v327 = vmul.f32 %v274, %v274
    %v328 = vmul.f32 %v275, %v275
    %v329 = vmul.f32 %v276, %v276
    %v330 = vmul.f32 %v277, %v277
    %v331 = vadd.f32 %v315, %v316
    %v332 = vadd.f32 %v331, %v317
    %v333 = vadd.f32 %v332, %v318
    %v334 = vadd.f32 %v333, %v319
    %v335 = vadd.f32 %v334, %v320
    %v336 = vadd.f32 %v335, %v321
    %v337 = vadd.f32 %v336, %v322
    %v338 = vadd.f32 %v337, %v323
    %v339 = vadd.f32 %v338, %v324
    %v340 = vadd.f32 %v339, %v325
    %v341 = vadd.f32 %v340, %v326
    %v342 = vadd.f32 %v341, %v327
    %v343 = vadd.f32 %v342, %v328
    %v344 = vadd.f32 %v343, %v329
    %v345 = vadd.f32 %v344, %v330
    %v346 = vrot.slane %v345, 4
    %v347 = vadd.f32 %v345, %v346
    %v348 = vrot.slane %v347, 2
    %v349 = vadd.f32 %v347, %v348
    %v350 = vrot.slane %v349, 1
    %v351 = vadd.f32 %v349, %v350
    %352 = vst [vmem:[%s3] sm:$0xff] %v314
    %353 = vst [vmem:[%s4] sm:$0xff] %v351
  $region17: #{basic_block_forward.8} parent=0 // pred_fallthru
    _
  // Predicated region
  $region18: #{basic_block_forward.8} parent=0 // pred_check
    _
  $region19: #{basic_block_forward.8} parent=0 // pred_check_branch
    %355 = sbr.rel (0) target = $region21
  $region20: #{basic_block_forward.8} parent=0 // pred_region
    _
  $region21: #{basic_block_forward.8} parent=0 // pred_fallthru
    _
  // Predicated region
  $region22: #{basic_block_forward.8} parent=0 // pred_check
    _
  $region23: #{basic_block_forward.8} parent=0 // pred_check_branch
    %357 = sbr.rel (0) target = $region25
  $region24: #{basic_block_forward.8} parent=0 // pred_region
    _
  $region25: #{basic_block_forward.8} parent=0 // pred_fallthru
    _
  // Predicated region
  $region26: #{basic_block_forward.8} parent=0 // pred_check
    _
  $region27: #{basic_block_forward.8} parent=0 // pred_check_branch
    %359 = sbr.rel (0) target = $region29
  $region28: #{basic_block_forward.8} parent=0 // pred_region
    _
  $region29: #{basic_block_forward.8} parent=0 // pred_fallthru
    _
  // Predicated region
  $region30: #{basic_block_forward.8} parent=0 // pred_check
    _
  $region31: #{basic_block_forward.8} parent=0 // pred_check_branch
    %361 = sbr.rel (0) target = $region33
  $region32: #{basic_block_forward.8} parent=0 // pred_region
    _
  $region33: #{basic_block_forward.8} parent=0 // pred_fallthru
    _
  // Predicated region
  $region34: #{basic_block_forward.8} parent=0 // pred_check
    _
  $region35: #{basic_block_forward.8} parent=0 // pred_check_branch
    %363 = sbr.rel (0) target = $region37
  $region36: #{basic_block_forward.8} parent=0 // pred_region
    _
  $region37: #{basic_block_forward.8} parent=0 // pred_fallthru
    _
  // Predicated region
  $region38: #{basic_block_forward.8} parent=0 // pred_check
    _
  $region39: #{basic_block_forward.8} parent=0 // pred_check_branch
    %365 = sbr.rel (0) target = $region41
  $region40: #{basic_block_forward.8} parent=0 // pred_region
    _
  $region41: #{basic_block_forward.8} parent=0 // pred_fallthru
    _

// kernel: basic_block_forward.7
$region0: #{basic_block_forward.7}
  #allocation0 [shape = 'u32[]', space=smem, size = 0x4, offset = 0x4, fixed_abs, tag = 'smem constant byte address 0x4 - core index']
  #allocation1 [shape = 'u32[72,128]{1,0:T(1,128)}', space=vmem, size = 0x9000, scoped, tag = 'internal scratch']
  %s0 = inlined_call_operand.vmem [shape: f32[128,128], index: 0, kind: input, shape index: {}]
  %s1 = inlined_call_operand.vmem [shape: f32[1,128], index: 1, kind: input, shape index: {}]
  %s2 = inlined_call_operand.vmem [shape: f32[1,128], index: 2, kind: input, shape index: {}]
  %s3 = inlined_call_operand.vmem [shape: f32[128,128], index: 3, kind: output, shape index: {}]
  %s4 = sld [smem:[#allocation0]]
  $region22: #{basic_block_forward.7} parent=0
    _
  %s6 = ssub.s32 1, %s4
  %s7 = scalar_select 0, %s6, %s4
  // Predicated region
  $region2: #{basic_block_forward.7} parent=0 // pred_check
    _
  $region3: #{basic_block_forward.7} parent=0 // pred_check_branch
    %9 = sbr.rel (0) target = $region5
  $region4: #{basic_block_forward.7} parent=0 // pred_region
    _
  $region5: #{basic_block_forward.7} parent=0 // pred_fallthru
    _
  // Predicated region
  $region6: #{basic_block_forward.7} parent=0 // pred_check
    _
  $region7: #{basic_block_forward.7} parent=0 // pred_check_branch
    %11 = sbr.rel (0) target = $region9
  $region8: #{basic_block_forward.7} parent=0 // pred_region
    _
  $region9: #{basic_block_forward.7} parent=0 // pred_fallthru
    _
  // Predicated region
  $region10: #{basic_block_forward.7} parent=0 // pred_check
    _
  $region11: #{basic_block_forward.7} parent=0 // pred_check_branch
    %13 = sbr.rel (0) target = $region13
  $region12: #{basic_block_forward.7} parent=0 // pred_region
    _
  $region13: #{basic_block_forward.7} parent=0 // pred_fallthru
    _
  %v14 = vld [vmem:[%s0] sm:$0xff]
  %v15 = vld [vmem:[%s0 + $0x8] sm:$0xff]
  %v16 = vld [vmem:[%s0 + $0x10] sm:$0xff]
  %v17 = vld [vmem:[%s0 + $0x18] sm:$0xff]
  %v18 = vld [vmem:[%s0 + $0x20] sm:$0xff]
  %v19 = vld [vmem:[%s0 + $0x28] sm:$0xff]
  %v20 = vld [vmem:[%s0 + $0x30] sm:$0xff]
  %v21 = vld [vmem:[%s0 + $0x38] sm:$0xff]
  %v22 = vld [vmem:[%s0 + $0x40] sm:$0xff]
  %v23 = vld [vmem:[%s0 + $0x48] sm:$0xff]
  %v24 = vld [vmem:[%s0 + $0x50] sm:$0xff]
  %v25 = vld [vmem:[%s0 + $0x58] sm:$0xff]
  %v26 = vld [vmem:[%s0 + $0x60] sm:$0xff]
  %v27 = vld [vmem:[%s0 + $0x68] sm:$0xff]
  %v28 = vld [vmem:[%s0 + $0x70] sm:$0xff]
  %v29 = vld [vmem:[%s0 + $0x78] sm:$0xff]
  %v30 = vld [vmem:[%s1] sm:$0x1]
  %v32 = vperm.slane %v30, 0
  %v34 = vmul.f32 %v14, %v32
  %v35 = vmul.f32 %v15, %v32
  %v36 = vmul.f32 %v16, %v32
  %v37 = vmul.f32 %v17, %v32
  %v38 = vmul.f32 %v18, %v32
  %v39 = vmul.f32 %v19, %v32
  %v40 = vmul.f32 %v20, %v32
  %v41 = vmul.f32 %v21, %v32
  %v42 = vmul.f32 %v22, %v32
  %v43 = vmul.f32 %v23, %v32
  %v44 = vmul.f32 %v24, %v32
  %v45 = vmul.f32 %v25, %v32
  %v46 = vmul.f32 %v26, %v32
  %v47 = vmul.f32 %v27, %v32
  %v48 = vmul.f32 %v28, %v32
  %v49 = vmul.f32 %v29, %v32
  %v50 = vld [vmem:[%s2] sm:$0x1]
  %v52 = vperm.slane %v50, 0
  %v54 = vadd.f32 %v34, %v52
  %v55 = vadd.f32 %v35, %v52
  %v56 = vadd.f32 %v36, %v52
  %v57 = vadd.f32 %v37, %v52
  %v58 = vadd.f32 %v38, %v52
  %v59 = vadd.f32 %v39, %v52
  %v60 = vadd.f32 %v40, %v52
  %v61 = vadd.f32 %v41, %v52
  %v62 = vadd.f32 %v42, %v52
  %v63 = vadd.f32 %v43, %v52
  %v64 = vadd.f32 %v44, %v52
  %v65 = vadd.f32 %v45, %v52
  %v66 = vadd.f32 %v46, %v52
  %v67 = vadd.f32 %v47, %v52
  %v68 = vadd.f32 %v48, %v52
  %v69 = vadd.f32 %v49, %v52
  %v70 = vmax.f32 %v54, 0.0
  %v71 = vmax.f32 %v55, 0.0
  %v72 = vmax.f32 %v56, 0.0
  %v73 = vmax.f32 %v57, 0.0
  %v74 = vmax.f32 %v58, 0.0
  %v75 = vmax.f32 %v59, 0.0
  %v76 = vmax.f32 %v60, 0.0
  %v77 = vmax.f32 %v61, 0.0
  %v78 = vmax.f32 %v62, 0.0
  %v79 = vmax.f32 %v63, 0.0
  %v80 = vmax.f32 %v64, 0.0
  %v81 = vmax.f32 %v65, 0.0
  %v82 = vmax.f32 %v66, 0.0
  %v83 = vmax.f32 %v67, 0.0
  %v84 = vmax.f32 %v68, 0.0
  %v85 = vmax.f32 %v69, 0.0
  %86 = vst [vmem:[%s3] sm:$0xff] %v70
  %87 = vst [vmem:[%s3 + $0x8] sm:$0xff] %v71
  %88 = vst [vmem:[%s3 + $0x10] sm:$0xff] %v72
  %89 = vst [vmem:[%s3 + $0x18] sm:$0xff] %v73
  %90 = vst [vmem:[%s3 + $0x20] sm:$0xff] %v74
  %91 = vst [vmem:[%s3 + $0x28] sm:$0xff] %v75
  %92 = vst [vmem:[%s3 + $0x30] sm:$0xff] %v76
  %93 = vst [vmem:[%s3 + $0x38] sm:$0xff] %v77
  %94 = vst [vmem:[%s3 + $0x40] sm:$0xff] %v78
  %95 = vst [vmem:[%s3 + $0x48] sm:$0xff] %v79
  %96 = vst [vmem:[%s3 + $0x50] sm:$0xff] %v80
  %97 = vst [vmem:[%s3 + $0x58] sm:$0xff] %v81
  %98 = vst [vmem:[%s3 + $0x60] sm:$0xff] %v82
  %99 = vst [vmem:[%s3 + $0x68] sm:$0xff] %v83
  %100 = vst [vmem:[%s3 + $0x70] sm:$0xff] %v84
  %101 = vst [vmem:[%s3 + $0x78] sm:$0xff] %v85
  // Predicated region
  $region14: #{basic_block_forward.7} parent=0 // pred_check
    _
  $region15: #{basic_block_forward.7} parent=0 // pred_check_branch
    %103 = sbr.rel (0) target = $region17
  $region16: #{basic_block_forward.7} parent=0 // pred_region
    _
  $region17: #{basic_block_forward.7} parent=0 // pred_fallthru
    _
  // Predicated region
  $region18: #{basic_block_forward.7} parent=0 // pred_check
    _
  $region19: #{basic_block_forward.7} parent=0 // pred_check_branch
    %105 = sbr.rel (0) target = $region21
  $region20: #{basic_block_forward.7} parent=0 // pred_region
    _
  $region21: #{basic_block_forward.7} parent=0 // pred_fallthru
    _

// kernel: basic_block_forward.11
$region0: #{basic_block_forward.11}
  #allocation0 [shape = 'u32[]', space=smem, size = 0x4, offset = 0x4, fixed_abs, tag = 'smem constant byte address 0x4 - core index']
  #allocation1 [shape = 'u32[72,128]{1,0:T(1,128)}', space=vmem, size = 0x9000, scoped, tag = 'internal scratch']
  %s0 = inlined_call_operand.vmem [shape: f32[128,128], index: 0, kind: input, shape index: {}]
  %s1 = inlined_call_operand.vmem [shape: f32[1,128], index: 1, kind: input, shape index: {}]
  %s2 = inlined_call_operand.vmem [shape: f32[1,128], index: 2, kind: input, shape index: {}]
  %s3 = inlined_call_operand.vmem [shape: f32[128,128], index: 3, kind: input, shape index: {}]
  %s4 = inlined_call_operand.vmem [shape: f32[128,128], index: 4, kind: output, shape index: {}]
  %s5 = sld [smem:[#allocation0]]
  $region26: #{basic_block_forward.11} parent=0
    _
  %s7 = ssub.s32 1, %s5
  %s8 = scalar_select 0, %s7, %s5
  // Predicated region
  $region2: #{basic_block_forward.11} parent=0 // pred_check
    _
  $region3: #{basic_block_forward.11} parent=0 // pred_check_branch
    %10 = sbr.rel (0) target = $region5
  $region4: #{basic_block_forward.11} parent=0 // pred_region
    _
  $region5: #{basic_block_forward.11} parent=0 // pred_fallthru
    _
  // Predicated region
  $region6: #{basic_block_forward.11} parent=0 // pred_check
    _
  $region7: #{basic_block_forward.11} parent=0 // pred_check_branch
    %12 = sbr.rel (0) target = $region9
  $region8: #{basic_block_forward.11} parent=0 // pred_region
    _
  $region9: #{basic_block_forward.11} parent=0 // pred_fallthru
    _
  // Predicated region
  $region10: #{basic_block_forward.11} parent=0 // pred_check
    _
  $region11: #{basic_block_forward.11} parent=0 // pred_check_branch
    %14 = sbr.rel (0) target = $region13
  $region12: #{basic_block_forward.11} parent=0 // pred_region
    _
  $region13: #{basic_block_forward.11} parent=0 // pred_fallthru
    _
  // Predicated region
  $region14: #{basic_block_forward.11} parent=0 // pred_check
    _
  $region15: #{basic_block_forward.11} parent=0 // pred_check_branch
    %16 = sbr.rel (0) target = $region17
  $region16: #{basic_block_forward.11} parent=0 // pred_region
    _
  $region17: #{basic_block_forward.11} parent=0 // pred_fallthru
    _
  %v17 = vld [vmem:[%s0] sm:$0xff]
  %v18 = vld [vmem:[%s0 + $0x8] sm:$0xff]
  %v19 = vld [vmem:[%s0 + $0x10] sm:$0xff]
  %v20 = vld [vmem:[%s0 + $0x18] sm:$0xff]
  %v21 = vld [vmem:[%s0 + $0x20] sm:$0xff]
  %v22 = vld [vmem:[%s0 + $0x28] sm:$0xff]
  %v23 = vld [vmem:[%s0 + $0x30] sm:$0xff]
  %v24 = vld [vmem:[%s0 + $0x38] sm:$0xff]
  %v25 = vld [vmem:[%s0 + $0x40] sm:$0xff]
  %v26 = vld [vmem:[%s0 + $0x48] sm:$0xff]
  %v27 = vld [vmem:[%s0 + $0x50] sm:$0xff]
  %v28 = vld [vmem:[%s0 + $0x58] sm:$0xff]
  %v29 = vld [vmem:[%s0 + $0x60] sm:$0xff]
  %v30 = vld [vmem:[%s0 + $0x68] sm:$0xff]
  %v31 = vld [vmem:[%s0 + $0x70] sm:$0xff]
  %v32 = vld [vmem:[%s0 + $0x78] sm:$0xff]
  %v33 = vld [vmem:[%s1] sm:$0x1]
  %v35 = vperm.slane %v33, 0
  %v37 = vmul.f32 %v17, %v35
  %v38 = vmul.f32 %v18, %v35
  %v39 = vmul.f32 %v19, %v35
  %v40 = vmul.f32 %v20, %v35
  %v41 = vmul.f32 %v21, %v35
  %v42 = vmul.f32 %v22, %v35
  %v43 = vmul.f32 %v23, %v35
  %v44 = vmul.f32 %v24, %v35
  %v45 = vmul.f32 %v25, %v35
  %v46 = vmul.f32 %v26, %v35
  %v47 = vmul.f32 %v27, %v35
  %v48 = vmul.f32 %v28, %v35
  %v49 = vmul.f32 %v29, %v35
  %v50 = vmul.f32 %v30, %v35
  %v51 = vmul.f32 %v31, %v35
  %v52 = vmul.f32 %v32, %v35
  %v53 = vld [vmem:[%s2] sm:$0x1]
  %v55 = vperm.slane %v53, 0
  %v57 = vadd.f32 %v37, %v55
  %v58 = vadd.f32 %v38, %v55
  %v59 = vadd.f32 %v39, %v55
  %v60 = vadd.f32 %v40, %v55
  %v61 = vadd.f32 %v41, %v55
  %v62 = vadd.f32 %v42, %v55
  %v63 = vadd.f32 %v43, %v55
  %v64 = vadd.f32 %v44, %v55
  %v65 = vadd.f32 %v45, %v55
  %v66 = vadd.f32 %v46, %v55
  %v67 = vadd.f32 %v47, %v55
  %v68 = vadd.f32 %v48, %v55
  %v69 = vadd.f32 %v49, %v55
  %v70 = vadd.f32 %v50, %v55
  %v71 = vadd.f32 %v51, %v55
  %v72 = vadd.f32 %v52, %v55
  %v73 = vld [vmem:[%s3] sm:$0xff]
  %v74 = vld [vmem:[%s3 + $0x8] sm:$0xff]
  %v75 = vld [vmem:[%s3 + $0x10] sm:$0xff]
  %v76 = vld [vmem:[%s3 + $0x18] sm:$0xff]
  %v77 = vld [vmem:[%s3 + $0x20] sm:$0xff]
  %v78 = vld [vmem:[%s3 + $0x28] sm:$0xff]
  %v79 = vld [vmem:[%s3 + $0x30] sm:$0xff]
  %v80 = vld [vmem:[%s3 + $0x38] sm:$0xff]
  %v81 = vld [vmem:[%s3 + $0x40] sm:$0xff]
  %v82 = vld [vmem:[%s3 + $0x48] sm:$0xff]
  %v83 = vld [vmem:[%s3 + $0x50] sm:$0xff]
  %v84 = vld [vmem:[%s3 + $0x58] sm:$0xff]
  %v85 = vld [vmem:[%s3 + $0x60] sm:$0xff]
  %v86 = vld [vmem:[%s3 + $0x68] sm:$0xff]
  %v87 = vld [vmem:[%s3 + $0x70] sm:$0xff]
  %v88 = vld [vmem:[%s3 + $0x78] sm:$0xff]
  %v89 = vadd.f32 %v57, %v73
  %v90 = vadd.f32 %v58, %v74
  %v91 = vadd.f32 %v59, %v75
  %v92 = vadd.f32 %v60, %v76
  %v93 = vadd.f32 %v61, %v77
  %v94 = vadd.f32 %v62, %v78
  %v95 = vadd.f32 %v63, %v79
  %v96 = vadd.f32 %v64, %v80
  %v97 = vadd.f32 %v65, %v81
  %v98 = vadd.f32 %v66, %v82
  %v99 = vadd.f32 %v67, %v83
  %v100 = vadd.f32 %v68, %v84
  %v101 = vadd.f32 %v69, %v85
  %v102 = vadd.f32 %v70, %v86
  %v103 = vadd.f32 %v71, %v87
  %v104 = vadd.f32 %v72, %v88
  %v105 = vmax.f32 %v89, 0.0
  %v106 = vmax.f32 %v90, 0.0
  %v107 = vmax.f32 %v91, 0.0
  %v108 = vmax.f32 %v92, 0.0
  %v109 = vmax.f32 %v93, 0.0
  %v110 = vmax.f32 %v94, 0.0
  %v111 = vmax.f32 %v95, 0.0
  %v112 = vmax.f32 %v96, 0.0
  %v113 = vmax.f32 %v97, 0.0
  %v114 = vmax.f32 %v98, 0.0
  %v115 = vmax.f32 %v99, 0.0
  %v116 = vmax.f32 %v100, 0.0
  %v117 = vmax.f32 %v101, 0.0
  %v118 = vmax.f32 %v102, 0.0
  %v119 = vmax.f32 %v103, 0.0
  %v120 = vmax.f32 %v104, 0.0
  %121 = vst [vmem:[%s4] sm:$0xff] %v105
  %122 = vst [vmem:[%s4 + $0x8] sm:$0xff] %v106
  %123 = vst [vmem:[%s4 + $0x10] sm:$0xff] %v107
  %124 = vst [vmem:[%s4 + $0x18] sm:$0xff] %v108
  %125 = vst [vmem:[%s4 + $0x20] sm:$0xff] %v109
  %126 = vst [vmem:[%s4 + $0x28] sm:$0xff] %v110
  %127 = vst [vmem:[%s4 + $0x30] sm:$0xff] %v111
  %128 = vst [vmem:[%s4 + $0x38] sm:$0xff] %v112
  %129 = vst [vmem:[%s4 + $0x40] sm:$0xff] %v113
  %130 = vst [vmem:[%s4 + $0x48] sm:$0xff] %v114
  %131 = vst [vmem:[%s4 + $0x50] sm:$0xff] %v115
  %132 = vst [vmem:[%s4 + $0x58] sm:$0xff] %v116
  %133 = vst [vmem:[%s4 + $0x60] sm:$0xff] %v117
  %134 = vst [vmem:[%s4 + $0x68] sm:$0xff] %v118
  %135 = vst [vmem:[%s4 + $0x70] sm:$0xff] %v119
  %136 = vst [vmem:[%s4 + $0x78] sm:$0xff] %v120
  // Predicated region
  $region18: #{basic_block_forward.11} parent=0 // pred_check
    _
  $region19: #{basic_block_forward.11} parent=0 // pred_check_branch
    %138 = sbr.rel (0) target = $region21
  $region20: #{basic_block_forward.11} parent=0 // pred_region
    _
  $region21: #{basic_block_forward.11} parent=0 // pred_fallthru
    _
  // Predicated region
  $region22: #{basic_block_forward.11} parent=0 // pred_check
    _
  $region23: #{basic_block_forward.11} parent=0 // pred_check_branch
    %140 = sbr.rel (0) target = $region25
  $region24: #{basic_block_forward.11} parent=0 // pred_region
    _
  $region25: #{basic_block_forward.11} parent=0 // pred_fallthru
    _

</llo_original>
